<compile_context>
chip_gen: v7x
topology: tpu7x:2x2x1
jax: 0.10.0
libtpu: 0.0.40
codegen_flags: <defaults>
</compile_context>

<pallas_src>
import functools

import jax
import jax.numpy as jnp
import numpy as np
from jax import lax
from jax.experimental import pallas as pl
from jax.experimental.pallas import tpu as pltpu


def _round_up(x, m):
    return (x + m - 1) // m * m


def _cdiv(a, b):
    return (a + b - 1) // b


def _actor_mlp_kernel(n_hidden, n_total, state_size, x_ref, w_ref, b_ref, o_ref):
    """Fused MLP forward for one (TM, ...) batch tile.

    x_ref: (TM, state_size)  raw activations (no lane padding on the input).
    w_ref: (L, P, P)         packed, pre-transposed (in, out) weights (f32/bf16).
    b_ref: (L, 1, P)         packed f32 bias rows.
    o_ref: (TM, P)           lane-dense f32 output slab (wrapper slices it).

    The first n_hidden linears apply ReLU; the final linear has no activation
    (output_activation is None in the PyTorch reference). Padded lanes stay 0
    through every layer (zero weight cols, zero bias, ReLU(0)=0).
    """
    mxu_dtype = w_ref.dtype

    def to_mxu(v):
        return v if v.dtype == mxu_dtype else v.astype(mxu_dtype)

    # ---- layer 0: (TM, state_size) @ (state_size, P), ReLU -----------------
    h = jnp.dot(to_mxu(x_ref[...]), w_ref[0, :state_size, :],
                preferred_element_type=jnp.float32)
    h = h + b_ref[0]                       # f32 bias add
    h = jnp.maximum(h, 0.0)                # f32 ReLU (v5e has no bf16 VPU)

    # ---- middle hidden layers 1 .. n_hidden-1, ReLU ------------------------
    def layer(i, h):
        y = jnp.dot(to_mxu(h), w_ref[i], preferred_element_type=jnp.float32)
        y = y + b_ref[i]
        return jnp.maximum(y, 0.0)

    n_mid = n_hidden - 1
    if 0 < n_mid <= 3:
        # Short: static unroll so the LLO scheduler sees the whole chain.
        for i in range(1, n_hidden):
            h = layer(i, h)
    elif n_mid > 3:
        # Deep: fori_loop bounds live ranges to one (P, P) weight tile,
        # avoiding vreg spills from a long unrolled chain.
        h = lax.fori_loop(1, n_hidden, layer, h)

    # ---- output layer: no activation ----------------------------------------
    h = jnp.dot(to_mxu(h), w_ref[n_total - 1], preferred_element_type=jnp.float32)
    h = h + b_ref[n_total - 1]
    o_ref[...] = h.astype(o_ref.dtype)


def pack_actor_params(weights_t, biases, state_size, param_dtype=jnp.bfloat16):
    """Pack per-layer parameters ONCE (at init) into two DMA-friendly buffers.

    weights_t: list of (fan_in, fan_out) matrices (W.T relative to PyTorch's
               (out, in) Linear weight), hidden layers first, output layer last.
    biases:    list of (fan_out,)-shaped (or (1, fan_out)) bias rows, same order.
    Returns (w_packed (L, P, P) in param_dtype, b_packed (L, 1, P) f32), with
    P = lane-aligned max feature width. Zero padding is numerically benign.
    """
    n_total = len(weights_t)
    dims = [state_size] + [w.shape[1] for w in weights_t]
    P = _round_up(max(dims), 128)
    w_np = np.zeros((n_total, P, P), dtype=np.float32)
    b_np = np.zeros((n_total, 1, P), dtype=np.float32)
    for i, (w, b) in enumerate(zip(weights_t, biases)):
        fi, fo = w.shape
        w_np[i, :fi, :fo] = np.asarray(w, dtype=np.float32)
        b_np[i, 0, :fo] = np.asarray(b, dtype=np.float32).reshape(fo)
    return jnp.asarray(w_np, dtype=param_dtype), jnp.asarray(b_np)


@functools.partial(jax.jit, static_argnames=("n_layers", "output_size", "block_batch"))
def actor_forward(x, w_packed, b_packed, *, n_layers, output_size, block_batch=512):
    """Actor forward: x (batch, state_size) -> (batch, output_size).

    w_packed/b_packed must come from pack_actor_params (built once at init).
    """
    batch, state_size = x.shape
    n_total, _, P = w_packed.shape
    assert n_total == n_layers + 1

    # Batch tile: multiple of 8 sublanes, large enough to amortize per-step
    # overhead, but capped so grid_m >= 2 whenever possible (both v7x TCs busy).
    TM = min(block_batch, _round_up(batch, 8))
    if batch >= 16:
        TM = min(TM, _round_up(_cdiv(batch, 2), 8))
    grid_m = _cdiv(batch, TM)

    kernel = functools.partial(_actor_mlp_kernel, n_layers, n_total, state_size)
    out = pl.pallas_call(
        kernel,
        out_shape=jax.ShapeDtypeStruct((batch, P), jnp.float32),
        grid_spec=pltpu.PrefetchScalarGridSpec(
            num_scalar_prefetch=0,
            grid=(grid_m,),
            in_specs=[
                # Activations: (TM, state_size) tile pipelined over the batch
                # grid; full-extent last dim avoids a lane-padded copy of x.
                pl.BlockSpec((TM, state_size), lambda m: (m, 0)),
                # Packed weights / biases: constant block index -> DMA'd once,
                # VMEM-resident across all batch tiles.
                # NOTE: when P grows (v7x has only 64 MiB VMEM), switch these to
                # pipeline_mode=pl.Buffered(1) or stream per layer via a grid axis.
                pl.BlockSpec((n_total, P, P), lambda m: (0, 0, 0)),
                pl.BlockSpec((n_total, 1, P), lambda m: (0, 0, 0)),
            ],
            out_specs=pl.BlockSpec((TM, P), lambda m: (m, 0)),
        ),
        compiler_params=pltpu.CompilerParams(
            dimension_semantics=("parallel",)),
    )(x, w_packed, b_packed)
    return out[:, :output_size]


def init_actor_params(key, state_size, hidden_size, output_size, n_layers):
    """Deterministic init mimicking nn.Linear's U(-1/sqrt(fan_in), 1/sqrt(fan_in)).
    Returns pre-transposed (fan_in, fan_out) weights and (1, fan_out) biases."""
    weights_t, biases = [], []
    dims = [(state_size if i == 0 else hidden_size, hidden_size)
            for i in range(n_layers)]
    dims.append((hidden_size, output_size))
    for (fan_in, fan_out) in dims:
        key, kw, kb = jax.random.split(key, 3)
        bound = 1.0 / np.sqrt(fan_in)
        w = jax.random.uniform(kw, (fan_in, fan_out), jnp.float32,
                               minval=-bound, maxval=bound)
        b = jax.random.uniform(kb, (1, fan_out), jnp.float32,
                               minval=-bound, maxval=bound)
        weights_t.append(w)
        biases.append(b)
    return weights_t, biases


def actor_reference(x, weights_t, biases, n_layers):
    """Pure-JAX reference for correctness checking."""
    h = x
    for i, (w, b) in enumerate(zip(weights_t, biases)):
        h = h @ w + b.reshape(1, -1)
        if i < n_layers:
            h = jnp.maximum(h, 0.0)
    return h


if __name__ == "__main__":
    # Small shapes consistent with the module's forward.
    state_size, hidden_size, output_size, n_layers = 32, 32, 8, 2

    key = jax.random.PRNGKey(0)
    key, kp = jax.random.split(key)
    weights_t, biases = init_actor_params(
        kp, state_size, hidden_size, output_size, n_layers)

    # Pack ONCE at init (hoisted off the per-call path).
    w_f32, b_f32 = pack_actor_params(weights_t, biases, state_size,
                                     param_dtype=jnp.float32)
    w_bf16, b_bf16 = pack_actor_params(weights_t, biases, state_size,
                                       param_dtype=jnp.bfloat16)

    fwd = functools.partial(actor_forward, n_layers=n_layers,
                            output_size=output_size)

    # 1) Tiny batch, single grid step, exact f32 path.
    key, kx = jax.random.split(key)
    x_small = jax.random.normal(kx, (8, state_size), jnp.float32)
    out_small = jax.block_until_ready(fwd(x_small, w_f32, b_f32))
    ref_small = actor_reference(x_small, weights_t, biases, n_layers)
    np.testing.assert_allclose(np.asarray(out_small), np.asarray(ref_small),
                               rtol=1e-5, atol=1e-5)

    # 2) Batch that doesn't divide the tile: exercises the masked boundary tile
    #    and a >=2-step parallel grid (both v7x TensorCores), f32 path.
    key, kx = jax.random.split(key)
    x_mid = jax.random.normal(kx, (200, state_size), jnp.float32)
    out_mid = jax.block_until_ready(fwd(x_mid, w_f32, b_f32))
    ref_mid = actor_reference(x_mid, weights_t, biases, n_layers)
    np.testing.assert_allclose(np.asarray(out_mid), np.asarray(ref_mid),
                               rtol=1e-5, atol=1e-5)

    # 3) Large batch on the bf16-weight path (MXU-native on v6e/v7x, f32 acc).
    #    Tolerance gated on param dtype.
    key, kx = jax.random.split(key)
    x_big = jax.random.normal(kx, (512, state_size), jnp.float32)
    out_big = jax.block_until_ready(fwd(x_big, w_bf16, b_bf16))
    ref_big = actor_reference(x_big, weights_t, biases, n_layers)
    np.testing.assert_allclose(np.asarray(out_big), np.asarray(ref_big),
                               rtol=2e-2, atol=2e-2)

    # 4) Deeper network exercising the fori_loop hidden-layer path.
    n_layers_deep, state_deep, hidden_deep, out_deep_dim = 5, 40, 64, 8
    key, kp2 = jax.random.split(key)
    w_deep_t, b_deep = init_actor_params(
        kp2, state_deep, hidden_deep, out_deep_dim, n_layers_deep)
    wp_deep, bp_deep = pack_actor_params(w_deep_t, b_deep, state_deep,
                                         param_dtype=jnp.float32)
    key, kx = jax.random.split(key)
    x_deep = jax.random.normal(kx, (64, state_deep), jnp.float32)
    out_deep = jax.block_until_ready(
        actor_forward(x_deep, wp_deep, bp_deep,
                      n_layers=n_layers_deep, output_size=out_deep_dim))
    ref_deep = actor_reference(x_deep, w_deep_t, b_deep, n_layers_deep)
    np.testing.assert_allclose(np.asarray(out_deep), np.asarray(ref_deep),
                               rtol=1e-4, atol=1e-4)

    print("KERNEL_OK")
</pallas_src>

<mosaic_0001>
module attributes {stable_mosaic.version = 11 : i64} {
  func.func @_actor_mlp_kernel(%arg0: i32, %arg1: memref<8x32xf32, #tpu.memory_space<vmem>>, %arg2: memref<3x128x128xf32, #tpu.memory_space<vmem>>, %arg3: memref<3x1x128xf32, #tpu.memory_space<vmem>>, %arg4: memref<8x128xf32, #tpu.memory_space<vmem>>) attributes {dimension_semantics = [#tpu.dimension_semantics<parallel>], iteration_bounds = array<i64: 1>, scalar_prefetch = 0 : i64, scratch_operands = 0 : i64, tpu.core_type = #tpu.core_type<tc>, window_params = [{transform_indices = @transform_0, window_bounds = array<i64: 8, 32>}, {pipeline_mode = #tpu.pipeline_mode<synchronous>, transform_indices = @transform_1, window_bounds = array<i64: 3, 128, 128>}, {pipeline_mode = #tpu.pipeline_mode<synchronous>, transform_indices = @transform_2, window_bounds = array<i64: 3, 1, 128>}, {transform_indices = @transform_3, window_bounds = array<i64: 8, 128>}]} {
    %c0 = arith.constant 0 : index
    %c0_0 = arith.constant 0 : index
    %0 = vector.load %arg1[%c0, %c0_0] : memref<8x32xf32, #tpu.memory_space<vmem>>, vector<8x32xf32>
    %c0_1 = arith.constant 0 : index
    %c0_2 = arith.constant 0 : index
    %c0_3 = arith.constant 0 : index
    %1 = vector.load %arg2[%c0_1, %c0_2, %c0_3] : memref<3x128x128xf32, #tpu.memory_space<vmem>>, vector<1x32x128xf32>
    %2 = vector.shape_cast %1 : vector<1x32x128xf32> to vector<32x128xf32>
    %cst = arith.constant dense<0.000000e+00> : vector<8x128xf32>
    %3 = tpu.matmul %0, %2, %cst {dimension_numbers = #tpu.dot_dimension_numbers<[1], [0], [0], [1], [0, 0, 1, 1], [], []>} : vector<8x32xf32>, vector<32x128xf32>, vector<8x128xf32> -> vector<8x128xf32>
    %c0_4 = arith.constant 0 : index
    %c0_5 = arith.constant 0 : index
    %c0_6 = arith.constant 0 : index
    %4 = vector.load %arg3[%c0_4, %c0_5, %c0_6] : memref<3x1x128xf32, #tpu.memory_space<vmem>>, vector<1x1x128xf32>
    %5 = vector.shape_cast %4 : vector<1x1x128xf32> to vector<1x128xf32>
    %6 = vector.broadcast %5 : vector<1x128xf32> to vector<8x128xf32>
    %7 = arith.addf %3, %6 : vector<8x128xf32>
    %cst_7 = arith.constant 0.000000e+00 : f32
    %8 = vector.broadcast %cst_7 : f32 to vector<8x128xf32>
    %9 = arith.maximumf %7, %8 : vector<8x128xf32>
    %c1 = arith.constant 1 : index
    %c0_8 = arith.constant 0 : index
    %c0_9 = arith.constant 0 : index
    %10 = vector.load %arg2[%c1, %c0_8, %c0_9] : memref<3x128x128xf32, #tpu.memory_space<vmem>>, vector<1x128x128xf32>
    %11 = vector.shape_cast %10 : vector<1x128x128xf32> to vector<128x128xf32>
    %cst_10 = arith.constant dense<0.000000e+00> : vector<8x128xf32>
    %12 = tpu.matmul %9, %11, %cst_10 {dimension_numbers = #tpu.dot_dimension_numbers<[1], [0], [0], [1], [0, 0, 1, 1], [], []>} : vector<8x128xf32>, vector<128x128xf32>, vector<8x128xf32> -> vector<8x128xf32>
    %c1_11 = arith.constant 1 : index
    %c0_12 = arith.constant 0 : index
    %c0_13 = arith.constant 0 : index
    %13 = vector.load %arg3[%c1_11, %c0_12, %c0_13] : memref<3x1x128xf32, #tpu.memory_space<vmem>>, vector<1x1x128xf32>
    %14 = vector.shape_cast %13 : vector<1x1x128xf32> to vector<1x128xf32>
    %15 = vector.broadcast %14 : vector<1x128xf32> to vector<8x128xf32>
    %16 = arith.addf %12, %15 : vector<8x128xf32>
    %cst_14 = arith.constant 0.000000e+00 : f32
    %17 = vector.broadcast %cst_14 : f32 to vector<8x128xf32>
    %18 = arith.maximumf %16, %17 : vector<8x128xf32>
    %c2 = arith.constant 2 : index
    %c0_15 = arith.constant 0 : index
    %c0_16 = arith.constant 0 : index
    %19 = vector.load %arg2[%c2, %c0_15, %c0_16] : memref<3x128x128xf32, #tpu.memory_space<vmem>>, vector<1x128x128xf32>
    %20 = vector.shape_cast %19 : vector<1x128x128xf32> to vector<128x128xf32>
    %cst_17 = arith.constant dense<0.000000e+00> : vector<8x128xf32>
    %21 = tpu.matmul %18, %20, %cst_17 {dimension_numbers = #tpu.dot_dimension_numbers<[1], [0], [0], [1], [0, 0, 1, 1], [], []>} : vector<8x128xf32>, vector<128x128xf32>, vector<8x128xf32> -> vector<8x128xf32>
    %c2_18 = arith.constant 2 : index
    %c0_19 = arith.constant 0 : index
    %c0_20 = arith.constant 0 : index
    %22 = vector.load %arg3[%c2_18, %c0_19, %c0_20] : memref<3x1x128xf32, #tpu.memory_space<vmem>>, vector<1x1x128xf32>
    %23 = vector.shape_cast %22 : vector<1x1x128xf32> to vector<1x128xf32>
    %24 = vector.broadcast %23 : vector<1x128xf32> to vector<8x128xf32>
    %25 = arith.addf %21, %24 : vector<8x128xf32>
    %c0_21 = arith.constant 0 : index
    %c0_22 = arith.constant 0 : index
    %26 = vector.load %arg4[%c0_21, %c0_22] : memref<8x128xf32, #tpu.memory_space<vmem>>, vector<8x128xf32>
    tpu.vector_store %arg4[%c0_21, %c0_22], %25 {strides = array<i32>} : memref<8x128xf32, #tpu.memory_space<vmem>>, vector<8x128xf32>,
    return
  }
  func.func @transform_0(%arg0: i32) -> (i32, i32) {
    %c0_i32 = arith.constant 0 : i32
    %c0_i32_0 = arith.constant 0 : i32
    return %arg0, %c0_i32 : i32, i32
  }
  func.func @transform_1(%arg0: i32) -> (i32, i32, i32) {
    %c0_i32 = arith.constant 0 : i32
    %c0_i32_0 = arith.constant 0 : i32
    %c0_i32_1 = arith.constant 0 : i32
    %c0_i32_2 = arith.constant 0 : i32
    return %c0_i32, %c0_i32_0, %c0_i32_1 : i32, i32, i32
  }
  func.func @transform_2(%arg0: i32) -> (i32, i32, i32) {
    %c0_i32 = arith.constant 0 : i32
    %c0_i32_0 = arith.constant 0 : i32
    %c0_i32_1 = arith.constant 0 : i32
    %c0_i32_2 = arith.constant 0 : i32
    return %c0_i32, %c0_i32_0, %c0_i32_1 : i32, i32, i32
  }
  func.func @transform_3(%arg0: i32) -> (i32, i32) {
    %c0_i32 = arith.constant 0 : i32
    %c0_i32_0 = arith.constant 0 : i32
    return %arg0, %c0_i32 : i32, i32
  }
}

</mosaic_0001>

<llo_original>
// kernel: actor_forward.1
$region0: #{actor_forward.1}
  #allocation0 [shape = 'u32[]', space=smem, size = 0x4, offset = 0x4, fixed_abs, tag = 'smem constant byte address 0x4 - core index']
  #allocation1 [shape = 'u32[144,128]{1,0:T(1,128)}', space=vmem, size = 0x12000, scoped, tag = 'internal scratch']
  %s0 = inlined_call_operand.hbm [shape: f32[8,32], index: 0, kind: input, shape index: {}]
  %s1 = inlined_call_operand.hbm [shape: f32[3,128,128], index: 1, kind: input, shape index: {}]
  %s2 = inlined_call_operand.vmem [shape: f32[3,1,128], index: 2, kind: input, shape index: {}]
  %s3 = inlined_call_operand.hbm [shape: f32[8,128], index: 3, kind: output, shape index: {}]
  %s4 = sld [smem:[#allocation0]]
  $region30: #{actor_forward.1} parent=0
    _
  %s6 = ssub.s32 1, %s4
  %s7 = scalar_select 0, %s6, %s4
  $region1: #{actor_forward.1} parent=0
    #allocation2 [shape = 'u8[4096]{0}', space=vmem, size = 0x1000, scoped, tag = 'input window, operand 0, single buffered']
    #allocation3 [shape = 's32[1]{0}', space=sflag, size = 0x4, scoped, tag = 'scoped memory for actor_forward.1']
    #allocation4 [shape = 's32[1]{0}', space=sflag, size = 0x4, scoped, tag = 'scoped memory for actor_forward.1']
    #allocation5 [shape = 'u8[196608]{0}', space=vmem, size = 0x30000, scoped, tag = 'input window, operand 1, single buffered']
    #allocation6 [shape = 's32[1]{0}', space=sflag, size = 0x4, scoped, tag = 'scoped memory for actor_forward.1']
    #allocation7 [shape = 'u8[4096]{0}', space=vmem, size = 0x1000, scoped, tag = 'output window, operand 0, single buffered']
    %8 = vsyncpa [#allocation3], 0
    %9 = vsyncpa [#allocation6], 0
    %10 = vsyncpa [#allocation4], 0
    // Predicated region
    $region2: #{actor_forward.1} parent=1 // pred_check
      _
    $region3: #{actor_forward.1} parent=1 // pred_check_branch
      %12 = sbr.rel (0) target = $region5
    $region4: #{actor_forward.1} parent=1 // pred_region
      %s14 = ssub.s32 128, 128
      %15 = vsyncadd [#allocation3], %s14
      %s17 = sshll.u32 [#allocation2], 4
      %s18 = int_to_ptr.vmem [resolvable:$true] %s17
      %20 = dma.hbm_to_vmem [thread:$0]  %s0, 128, %s18, [#allocation3]
    $region5: #{actor_forward.1} parent=1 // pred_fallthru
      _
    // Predicated region
    $region6: #{actor_forward.1} parent=1 // pred_check
      _
    $region7: #{actor_forward.1} parent=1 // pred_check_branch
      %22 = sbr.rel (0) target = $region9
    $region8: #{actor_forward.1} parent=1 // pred_region
      %s24 = ssub.s32 6144, 6144
      %25 = vsyncadd [#allocation6], %s24
      %s26 = sshll.u32 [#allocation5], 4
      %s27 = int_to_ptr.vmem [resolvable:$true] %s26
      %32 = dma.hbm_to_vmem [thread:$0]  %s1, 6144, %s27, [#allocation6], 128, 128, 8
    $region9: #{actor_forward.1} parent=1 // pred_fallthru
      _
    // Predicated region
    $region10: #{actor_forward.1} parent=1 // pred_check
      _
    $region11: #{actor_forward.1} parent=1 // pred_check_branch
      %34 = sbr.rel (0) target = $region13
    $region12: #{actor_forward.1} parent=1 // pred_region
      _
    $region13: #{actor_forward.1} parent=1 // pred_fallthru
      _
    // Predicated region
    $region14: #{actor_forward.1} parent=1 // pred_check
      _
    $region15: #{actor_forward.1} parent=1 // pred_check_branch
      %36 = sbr.rel (0) target = $region17
    $region16: #{actor_forward.1} parent=1 // pred_region
      %37 = dma.done [#allocation3], 128
    $region17: #{actor_forward.1} parent=1 // pred_fallthru
      _
    // Predicated region
    $region18: #{actor_forward.1} parent=1 // pred_check
      _
    $region19: #{actor_forward.1} parent=1 // pred_check_branch
      %39 = sbr.rel (0) target = $region21
    $region20: #{actor_forward.1} parent=1 // pred_region
      %40 = dma.done [#allocation6], 6144
    $region21: #{actor_forward.1} parent=1 // pred_fallthru
      _
    %v41 = vld [vmem:[#allocation2] sm:$0xff]
    %v42 = vld [vmem:[#allocation5] sm:$0xff]
    %v43 = vld [vmem:[#allocation5 + $0x8] sm:$0xff]
    %v44 = vld [vmem:[#allocation5 + $0x10] sm:$0xff]
    %v45 = vld [vmem:[#allocation5 + $0x18] sm:$0xff]
    %v46 = vld [vmem:[%s2] sm:$0x1]
    %v48 = vlaneseq
    %v49 = vshrl.u32 %v48, 7
    %v50 = vsub.s32 0, %v49
    %v51 = vrot.slane %v46, %v50
    %vm53 = vcmask 261120
    %v55 = vsel %vm53, %v41, 0
    %57 = vmatprep.subr.mxu0 0.0
    %58 = vmatpush1.msra.mxu0 %v42
    %59 = vmatprep.subr.mxu0 0.0
    %60 = vmatpush1.msra.mxu0 %v43
    %61 = vmatprep.subr.mxu0 0.0
    %62 = vmatpush1.msra.mxu0 %v44
    %63 = vmatprep.subr.mxu0 0.0
    %64 = vmatpush1.msra.mxu0 %v45
    %65 = vmatprep.subr.mxu0 0.0
    %66 = vmatpush1.msra.mxu0 0.0
    %67 = vmatprep.subr.mxu0 0.0
    %68 = vmatpush1.msra.mxu0 0.0
    %69 = vmatprep.subr.mxu0 0.0
    %70 = vmatpush1.msra.mxu0 0.0
    %71 = vmatprep.subr.mxu0 0.0
    %72 = vmatpush1.msra.mxu0 0.0
    %73 = vmatprep.subr.mxu0 0.0
    %74 = vmatpush1.msra.mxu0 0.0
    %75 = vmatprep.subr.mxu0 0.0
    %76 = vmatpush1.msra.mxu0 0.0
    %77 = vmatprep.subr.mxu0 0.0
    %78 = vmatpush1.msra.mxu0 0.0
    %79 = vmatprep.subr.mxu0 0.0
    %80 = vmatpush1.msra.mxu0 0.0
    %81 = vmatprep.subr.mxu0 0.0
    %82 = vmatpush1.msra.mxu0 0.0
    %83 = vmatprep.subr.mxu0 0.0
    %84 = vmatpush1.msra.mxu0 0.0
    %85 = vmatprep.subr.mxu0 0.0
    %86 = vmatpush1.msra.mxu0 0.0
    %87 = vmatprep.subr.mxu0 0.0
    %88 = vmatpush1.msra.mxu0 0.0
    %89 = vmatprep.subr.mxu0 0.0
    %90 = vmatpush1.msra.mxu0 0.0
    %91 = vmatprep.subr.mxu0 0.0
    %92 = vmatpush1.msra.mxu0 0.0
    %93 = vmatprep.subr.mxu0 0.0
    %94 = vmatpush1.msra.mxu0 0.0
    %95 = vmatprep.subr.mxu0 0.0
    %96 = vmatpush1.msra.mxu0 0.0
    %97 = vmatprep.subr.mxu0 0.0
    %98 = vmatpush1.msra.mxu0 0.0
    %99 = vmatprep.subr.mxu0 0.0
    %100 = vmatpush1.msra.mxu0 0.0
    %101 = vmatprep.subr.mxu0 0.0
    %102 = vmatpush1.msra.mxu0 0.0
    %103 = vmatprep.subr.mxu0 0.0
    %104 = vmatpush1.msra.mxu0 0.0
    %105 = vmatprep.subr.mxu0 0.0
    %106 = vmatpush1.msra.mxu0 0.0
    %107 = vmatprep.subr.mxu0 0.0
    %108 = vmatpush1.msra.mxu0 0.0
    %109 = vmatprep.subr.mxu0 0.0
    %110 = vmatpush1.msra.mxu0 0.0
    %111 = vmatprep.subr.mxu0 0.0
    %112 = vmatpush1.msra.mxu0 0.0
    %113 = vmatprep.subr.mxu0 0.0
    %114 = vmatpush1.msra.mxu0 0.0
    %115 = vmatprep.subr.mxu0 0.0
    %116 = vmatpush1.msra.mxu0 0.0
    %117 = vmatprep.subr.mxu0 0.0
    %118 = vmatpush1.msra.mxu0 0.0
    %119 = vmatprep.subr.mxu0 0.0
    %120 = vmatpush1.msra.mxu0 0.0
    %121 = vmatprep.mubr.f32.mxu0 0.0
    %122 = vmatmul.mubr.f32.gmra.mrb[0].mxu0 %v55
    %v123 = vpop.f32.mrb[0].mxu0
    %v124 = vadd.f32 %v51, %v123
    %v125 = vpop.f32.mrb[0].mxu0
    %126 = vdwg.mxu0
    %v127 = vmax.f32 %v124, 0.0
    %s128 = scalar_lea.vmem [#allocation5], 128
    %v129 = vld [vmem:[%s128] sm:$0xff]
    %v130 = vld [vmem:[%s128 + $0x8] sm:$0xff]
    %v131 = vld [vmem:[%s128 + $0x10] sm:$0xff]
    %v132 = vld [vmem:[%s128 + $0x18] sm:$0xff]
    %v133 = vld [vmem:[%s128 + $0x20] sm:$0xff]
    %v134 = vld [vmem:[%s128 + $0x28] sm:$0xff]
    %v135 = vld [vmem:[%s128 + $0x30] sm:$0xff]
    %v136 = vld [vmem:[%s128 + $0x38] sm:$0xff]
    %v137 = vld [vmem:[%s128 + $0x40] sm:$0xff]
    %v138 = vld [vmem:[%s128 + $0x48] sm:$0xff]
    %v139 = vld [vmem:[%s128 + $0x50] sm:$0xff]
    %v140 = vld [vmem:[%s128 + $0x58] sm:$0xff]
    %v141 = vld [vmem:[%s128 + $0x60] sm:$0xff]
    %v142 = vld [vmem:[%s128 + $0x68] sm:$0xff]
    %v143 = vld [vmem:[%s128 + $0x70] sm:$0xff]
    %v144 = vld [vmem:[%s128 + $0x78] sm:$0xff]
    %s145 = scalar_lea.vmem %s2, 1
    %v146 = vld [vmem:[%s145] sm:$0x1]
    %v148 = vlaneseq
    %v149 = vshrl.u32 %v148, 7
    %v150 = vsub.s32 0, %v149
    %v151 = vrot.slane %v146, %v150
    %153 = vmatprep.subr.mxu0 0.0
    %154 = vmatpush1.msra.mxu0 %v129
    %155 = vmatprep.subr.mxu0 0.0
    %156 = vmatpush1.msra.mxu0 %v130
    %157 = vmatprep.subr.mxu0 0.0
    %158 = vmatpush1.msra.mxu0 %v131
    %159 = vmatprep.subr.mxu0 0.0
    %160 = vmatpush1.msra.mxu0 %v132
    %161 = vmatprep.subr.mxu0 0.0
    %162 = vmatpush1.msra.mxu0 %v133
    %163 = vmatprep.subr.mxu0 0.0
    %164 = vmatpush1.msra.mxu0 %v134
    %165 = vmatprep.subr.mxu0 0.0
    %166 = vmatpush1.msra.mxu0 %v135
    %167 = vmatprep.subr.mxu0 0.0
    %168 = vmatpush1.msra.mxu0 %v136
    %169 = vmatprep.subr.mxu0 0.0
    %170 = vmatpush1.msra.mxu0 %v137
    %171 = vmatprep.subr.mxu0 0.0
    %172 = vmatpush1.msra.mxu0 %v138
    %173 = vmatprep.subr.mxu0 0.0
    %174 = vmatpush1.msra.mxu0 %v139
    %175 = vmatprep.subr.mxu0 0.0
    %176 = vmatpush1.msra.mxu0 %v140
    %177 = vmatprep.subr.mxu0 0.0
    %178 = vmatpush1.msra.mxu0 %v141
    %179 = vmatprep.subr.mxu0 0.0
    %180 = vmatpush1.msra.mxu0 %v142
    %181 = vmatprep.subr.mxu0 0.0
    %182 = vmatpush1.msra.mxu0 %v143
    %183 = vmatprep.subr.mxu0 0.0
    %184 = vmatpush1.msra.mxu0 %v144
    %185 = vmatprep.subr.mxu0 0.0
    %186 = vmatpush1.msra.mxu0 0.0
    %187 = vmatprep.subr.mxu0 0.0
    %188 = vmatpush1.msra.mxu0 0.0
    %189 = vmatprep.subr.mxu0 0.0
    %190 = vmatpush1.msra.mxu0 0.0
    %191 = vmatprep.subr.mxu0 0.0
    %192 = vmatpush1.msra.mxu0 0.0
    %193 = vmatprep.subr.mxu0 0.0
    %194 = vmatpush1.msra.mxu0 0.0
    %195 = vmatprep.subr.mxu0 0.0
    %196 = vmatpush1.msra.mxu0 0.0
    %197 = vmatprep.subr.mxu0 0.0
    %198 = vmatpush1.msra.mxu0 0.0
    %199 = vmatprep.subr.mxu0 0.0
    %200 = vmatpush1.msra.mxu0 0.0
    %201 = vmatprep.subr.mxu0 0.0
    %202 = vmatpush1.msra.mxu0 0.0
    %203 = vmatprep.subr.mxu0 0.0
    %204 = vmatpush1.msra.mxu0 0.0
    %205 = vmatprep.subr.mxu0 0.0
    %206 = vmatpush1.msra.mxu0 0.0
    %207 = vmatprep.subr.mxu0 0.0
    %208 = vmatpush1.msra.mxu0 0.0
    %209 = vmatprep.subr.mxu0 0.0
    %210 = vmatpush1.msra.mxu0 0.0
    %211 = vmatprep.subr.mxu0 0.0
    %212 = vmatpush1.msra.mxu0 0.0
    %213 = vmatprep.subr.mxu0 0.0
    %214 = vmatpush1.msra.mxu0 0.0
    %215 = vmatprep.subr.mxu0 0.0
    %216 = vmatpush1.msra.mxu0 0.0
    %217 = vmatprep.mubr.f32.mxu0 0.0
    %218 = vmatmul.mubr.f32.gmra.mrb[0].mxu0 %v127
    %v219 = vpop.f32.mrb[0].mxu0
    %v220 = vadd.f32 %v151, %v219
    %v221 = vpop.f32.mrb[0].mxu0
    %222 = vdwg.mxu0
    %v223 = vmax.f32 %v220, 0.0
    %s224 = scalar_lea.vmem [#allocation5], 256
    %v225 = vld [vmem:[%s224] sm:$0xff]
    %v226 = vld [vmem:[%s224 + $0x8] sm:$0xff]
    %v227 = vld [vmem:[%s224 + $0x10] sm:$0xff]
    %v228 = vld [vmem:[%s224 + $0x18] sm:$0xff]
    %v229 = vld [vmem:[%s224 + $0x20] sm:$0xff]
    %v230 = vld [vmem:[%s224 + $0x28] sm:$0xff]
    %v231 = vld [vmem:[%s224 + $0x30] sm:$0xff]
    %v232 = vld [vmem:[%s224 + $0x38] sm:$0xff]
    %v233 = vld [vmem:[%s224 + $0x40] sm:$0xff]
    %v234 = vld [vmem:[%s224 + $0x48] sm:$0xff]
    %v235 = vld [vmem:[%s224 + $0x50] sm:$0xff]
    %v236 = vld [vmem:[%s224 + $0x58] sm:$0xff]
    %v237 = vld [vmem:[%s224 + $0x60] sm:$0xff]
    %v238 = vld [vmem:[%s224 + $0x68] sm:$0xff]
    %v239 = vld [vmem:[%s224 + $0x70] sm:$0xff]
    %v240 = vld [vmem:[%s224 + $0x78] sm:$0xff]
    %s241 = scalar_lea.vmem %s2, 2
    %v242 = vld [vmem:[%s241] sm:$0x1]
    %v244 = vlaneseq
    %v245 = vshrl.u32 %v244, 7
    %v246 = vsub.s32 0, %v245
    %v247 = vrot.slane %v242, %v246
    %249 = vmatprep.subr.mxu0 0.0
    %250 = vmatpush1.msra.mxu0 %v225
    %251 = vmatprep.subr.mxu0 0.0
    %252 = vmatpush1.msra.mxu0 %v226
    %253 = vmatprep.subr.mxu0 0.0
    %254 = vmatpush1.msra.mxu0 %v227
    %255 = vmatprep.subr.mxu0 0.0
    %256 = vmatpush1.msra.mxu0 %v228
    %257 = vmatprep.subr.mxu0 0.0
    %258 = vmatpush1.msra.mxu0 %v229
    %259 = vmatprep.subr.mxu0 0.0
    %260 = vmatpush1.msra.mxu0 %v230
    %261 = vmatprep.subr.mxu0 0.0
    %262 = vmatpush1.msra.mxu0 %v231
    %263 = vmatprep.subr.mxu0 0.0
    %264 = vmatpush1.msra.mxu0 %v232
    %265 = vmatprep.subr.mxu0 0.0
    %266 = vmatpush1.msra.mxu0 %v233
    %267 = vmatprep.subr.mxu0 0.0
    %268 = vmatpush1.msra.mxu0 %v234
    %269 = vmatprep.subr.mxu0 0.0
    %270 = vmatpush1.msra.mxu0 %v235
    %271 = vmatprep.subr.mxu0 0.0
    %272 = vmatpush1.msra.mxu0 %v236
    %273 = vmatprep.subr.mxu0 0.0
    %274 = vmatpush1.msra.mxu0 %v237
    %275 = vmatprep.subr.mxu0 0.0
    %276 = vmatpush1.msra.mxu0 %v238
    %277 = vmatprep.subr.mxu0 0.0
    %278 = vmatpush1.msra.mxu0 %v239
    %279 = vmatprep.subr.mxu0 0.0
    %280 = vmatpush1.msra.mxu0 %v240
    %281 = vmatprep.subr.mxu0 0.0
    %282 = vmatpush1.msra.mxu0 0.0
    %283 = vmatprep.subr.mxu0 0.0
    %284 = vmatpush1.msra.mxu0 0.0
    %285 = vmatprep.subr.mxu0 0.0
    %286 = vmatpush1.msra.mxu0 0.0
    %287 = vmatprep.subr.mxu0 0.0
    %288 = vmatpush1.msra.mxu0 0.0
    %289 = vmatprep.subr.mxu0 0.0
    %290 = vmatpush1.msra.mxu0 0.0
    %291 = vmatprep.subr.mxu0 0.0
    %292 = vmatpush1.msra.mxu0 0.0
    %293 = vmatprep.subr.mxu0 0.0
    %294 = vmatpush1.msra.mxu0 0.0
    %295 = vmatprep.subr.mxu0 0.0
    %296 = vmatpush1.msra.mxu0 0.0
    %297 = vmatprep.subr.mxu0 0.0
    %298 = vmatpush1.msra.mxu0 0.0
    %299 = vmatprep.subr.mxu0 0.0
    %300 = vmatpush1.msra.mxu0 0.0
    %301 = vmatprep.subr.mxu0 0.0
    %302 = vmatpush1.msra.mxu0 0.0
    %303 = vmatprep.subr.mxu0 0.0
    %304 = vmatpush1.msra.mxu0 0.0
    %305 = vmatprep.subr.mxu0 0.0
    %306 = vmatpush1.msra.mxu0 0.0
    %307 = vmatprep.subr.mxu0 0.0
    %308 = vmatpush1.msra.mxu0 0.0
    %309 = vmatprep.subr.mxu0 0.0
    %310 = vmatpush1.msra.mxu0 0.0
    %311 = vmatprep.subr.mxu0 0.0
    %312 = vmatpush1.msra.mxu0 0.0
    %313 = vmatprep.mubr.f32.mxu0 0.0
    %314 = vmatmul.mubr.f32.gmra.mrb[0].mxu0 %v223
    %v315 = vpop.f32.mrb[0].mxu0
    %v316 = vadd.f32 %v247, %v315
    %v317 = vpop.f32.mrb[0].mxu0
    %318 = vdwg.mxu0
    %319 = vst [vmem:[#allocation7] sm:$0xff] %v316
    // Predicated region
    $region22: #{actor_forward.1} parent=1 // pred_check
      _
    $region23: #{actor_forward.1} parent=1 // pred_check_branch
      %321 = sbr.rel (0) target = $region25
    $region24: #{actor_forward.1} parent=1 // pred_region
      %s323 = ssub.s32 128, 128
      %324 = vsyncadd [#allocation4], %s323
      %s326 = sshll.u32 [#allocation7], 4
      %s327 = int_to_ptr.vmem [resolvable:$true] %s326
      %329 = dma.vmem_to_hbm [thread:$0]  %s327, 128, %s3, [#allocation4]
    $region25: #{actor_forward.1} parent=1 // pred_fallthru
      _
    // Predicated region
    $region26: #{actor_forward.1} parent=1 // pred_check
      _
    $region27: #{actor_forward.1} parent=1 // pred_check_branch
      %331 = sbr.rel (0) target = $region29
    $region28: #{actor_forward.1} parent=1 // pred_region
      %332 = dma.done [#allocation4], 128
    $region29: #{actor_forward.1} parent=1 // pred_fallthru
      _
    %333 = vsyncpa [#allocation3], 1
    %334 = vsyncpa [#allocation6], 1
    %335 = vsyncpa [#allocation4], 1

</llo_original>
